<compile_context>
chip_gen: v7x
topology: tpu7x:2x2x1
jax: 0.10.0
libtpu: 0.0.40
codegen_flags: <defaults>
</compile_context>

<pallas_src>
import functools

import jax
import jax.numpy as jnp
from jax import lax
from jax.experimental import pallas as pl
from jax.experimental.pallas import tpu as pltpu

# Unroll the embedding gather at trace time when N is small; use a fori_loop
# above this threshold to bound trace / compile size.
_GATHER_UNROLL_LIMIT = 128


def _drug_decoder_kernel(ids_ref, hid_ref, emb_ref, out_ref, et_ref, *, n_drugs):
    # ids_ref : SMEM (N,) int32          -- scalar-prefetched drug ids
    # hid_ref : VMEM (Bt, N, H)          -- one batch tile of activations
    # emb_ref : VMEM (drg_size, H)       -- full embedding table (resident)
    # out_ref : VMEM (Bt, N)             -- logits tile
    # et_ref  : VMEM (N, H) f32 scratch  -- gathered embedding rows

    # Fused embedding gather: dynamic (SMEM-scalar) row load -> scratch row.
    if n_drugs <= _GATHER_UNROLL_LIMIT:
        for n in range(n_drugs):                           # static store index
            row = ids_ref[n]                               # SMEM scalar read
            et_ref[pl.ds(n, 1), :] = emb_ref[pl.ds(row, 1), :].astype(jnp.float32)
    else:
        def gather_body(n, carry):
            row = ids_ref[n]
            et_ref[pl.ds(n, 1), :] = emb_ref[pl.ds(row, 1), :].astype(jnp.float32)
            return carry
        lax.fori_loop(0, n_drugs, gather_body, 0)

    hid = hid_ref[...]                                     # (Bt, N, H)
    if hid.dtype != jnp.float32:                           # bf16 path: upcast at the multiply only
        hid = hid.astype(jnp.float32)

    prod = hid * et_ref[...][None, :, :]                   # VPU multiply, (Bt, N, H)
    out_ref[...] = jnp.sum(prod, axis=-1).astype(out_ref.dtype)   # XLU reduce over H


def _choose_batch_tile(batch, n_drugs, hidden, itemsize):
    """Rows per grid step: multi-MB double-buffered tiles, v5e-safe VMEM budget."""
    budget_bytes = 10 * 1024 * 1024                 # 2 x ~5 MiB hid buffers + headroom (< 16 MiB)
    bt = max(1, budget_bytes // (2 * n_drugs * hidden * itemsize))
    bt = min(bt, batch)
    # Prefer >=4 balanced grid steps (v7x: 2 TensorCores share the parallel
    # axis), but never shrink tiles below ~1 MiB to keep the DMA pipeline fed.
    if bt == batch and batch >= 32:
        bt4 = -(-batch // 4)
        if bt4 * n_drugs * hidden * itemsize >= (1 << 20):
            bt = bt4
    if bt < batch:
        bt = max(8, (bt // 8) * 8)                  # 8-aligned second-minor dim of the output tile
    return min(bt, batch)


def drug_decoder_forward(hid_omc, emb_table, drg_bias, drg_ids):
    """hid_omc: (B, N, H); emb_table: (drg_size, H); drg_ids: (N,) int.

    Returns logits of shape (B, N).  `drg_bias` is accepted for API parity with
    the PyTorch module, whose forward builds it but never applies it.
    """
    del drg_bias                                     # intentionally unused (matches PyTorch)
    B, N, H = hid_omc.shape
    drg_size, _ = emb_table.shape
    drg_ids = drg_ids.astype(jnp.int32)

    itemsize = jnp.dtype(hid_omc.dtype).itemsize
    bt = _choose_batch_tile(B, N, H, itemsize)
    grid = (pl.cdiv(B, bt),)

    cost = pl.CostEstimate(
        flops=2 * B * N * H,
        transcendentals=0,
        bytes_accessed=(B * N * H * itemsize
                        + drg_size * H * jnp.dtype(emb_table.dtype).itemsize
                        + N * 4
                        + B * N * 4),
    )

    kernel = functools.partial(_drug_decoder_kernel, n_drugs=N)

    return pl.pallas_call(
        kernel,
        out_shape=jax.ShapeDtypeStruct((B, N), jnp.float32),
        grid_spec=pltpu.PrefetchScalarGridSpec(
            num_scalar_prefetch=1,                   # drg_ids -> SMEM
            grid=grid,
            in_specs=[
                # Large per-step batch tile, auto double-buffered.
                pl.BlockSpec((bt, N, H), lambda i, ids: (i, 0, 0)),
                # Full embedding table, constant block index -> fetched once,
                # stays resident across all grid steps.
                pl.BlockSpec((drg_size, H), lambda i, ids: (0, 0)),
            ],
            out_specs=pl.BlockSpec((bt, N), lambda i, ids: (i, 0)),
            scratch_shapes=[pltpu.VMEM((N, H), jnp.float32)],
        ),
        compiler_params=pltpu.CompilerParams(
            dimension_semantics=("parallel",),       # batch tiles shard across TCs
        ),
        cost_estimate=cost,
    )(drg_ids, hid_omc, emb_table)


if __name__ == "__main__":
    key = jax.random.PRNGKey(0)
    B, N, H = 2, 8, 32            # batch, number of queried drugs, hidden dim
    drg_size = 16                 # embedding table rows (> N so the gather is non-trivial)

    k1, k2, k3 = jax.random.split(key, 3)
    hid_omc = jax.random.normal(k1, (B, N, H), dtype=jnp.float32)
    emb_table = jax.random.normal(k2, (drg_size, H), dtype=jnp.float32)
    drg_bias = jnp.zeros((drg_size,), dtype=jnp.float32)   # unused, API parity only
    drg_ids = jax.random.randint(k3, (N,), 0, drg_size, dtype=jnp.int32)

    out = drug_decoder_forward(hid_omc, emb_table, drg_bias, drg_ids)
    out = jax.block_until_ready(out)

    # Pure-JAX reference of the PyTorch semantics.
    e_t = emb_table[drg_ids]                                # (N, H)
    ref = jnp.sum(hid_omc * e_t[None, :, :], axis=-1)       # (B, N)
    assert out.shape == (B, N)
    assert jnp.allclose(out, ref, atol=1e-5), "Pallas output mismatch vs reference"

    print("KERNEL_OK")
</pallas_src>

<mosaic_0001>
module attributes {stable_mosaic.version = 11 : i64} {
  func.func @_drug_decoder_kernel(%arg0: i32, %arg1: memref<8xi32, #tpu.memory_space<smem>>, %arg2: memref<2x8x32xf32, #tpu.memory_space<vmem>>, %arg3: memref<16x32xf32, #tpu.memory_space<vmem>>, %arg4: memref<2x8xf32, #tpu.memory_space<vmem>>, %arg5: memref<8x32xf32, #tpu.memory_space<vmem>>) attributes {dimension_semantics = [#tpu.dimension_semantics<parallel>], iteration_bounds = array<i64: 1>, scalar_prefetch = 1 : i64, scratch_operands = 1 : i64, tpu.core_type = #tpu.core_type<tc>, window_params = [{transform_indices = @transform_0, window_bounds = array<i64: 2, 8, 32>}, {pipeline_mode = #tpu.pipeline_mode<synchronous>, transform_indices = @transform_1, window_bounds = array<i64: 16, 32>}, {transform_indices = @transform_2, window_bounds = array<i64: 2, 8>}]} {
    %c0 = arith.constant 0 : index
    %0 = memref.load %arg1[%c0] : memref<8xi32, #tpu.memory_space<smem>>
    %1 = arith.index_cast %0 : i32 to index
    %c0_0 = arith.constant 0 : index
    %2 = vector.load %arg3[%1, %c0_0] : memref<16x32xf32, #tpu.memory_space<vmem>>, vector<1x32xf32>
    %c0_1 = arith.constant 0 : index
    %c0_2 = arith.constant 0 : index
    %3 = vector.load %arg5[%c0_1, %c0_2] : memref<8x32xf32, #tpu.memory_space<vmem>>, vector<1x32xf32>
    tpu.vector_store %arg5[%c0_1, %c0_2], %2 {strides = array<i32>} : memref<8x32xf32, #tpu.memory_space<vmem>>, vector<1x32xf32>,
    %c1 = arith.constant 1 : index
    %4 = memref.load %arg1[%c1] : memref<8xi32, #tpu.memory_space<smem>>
    %5 = arith.index_cast %4 : i32 to index
    %c0_3 = arith.constant 0 : index
    %6 = vector.load %arg3[%5, %c0_3] : memref<16x32xf32, #tpu.memory_space<vmem>>, vector<1x32xf32>
    %c1_4 = arith.constant 1 : index
    %c0_5 = arith.constant 0 : index
    %7 = vector.load %arg5[%c1_4, %c0_5] : memref<8x32xf32, #tpu.memory_space<vmem>>, vector<1x32xf32>
    tpu.vector_store %arg5[%c1_4, %c0_5], %6 {strides = array<i32>} : memref<8x32xf32, #tpu.memory_space<vmem>>, vector<1x32xf32>,
    %c2 = arith.constant 2 : index
    %8 = memref.load %arg1[%c2] : memref<8xi32, #tpu.memory_space<smem>>
    %9 = arith.index_cast %8 : i32 to index
    %c0_6 = arith.constant 0 : index
    %10 = vector.load %arg3[%9, %c0_6] : memref<16x32xf32, #tpu.memory_space<vmem>>, vector<1x32xf32>
    %c2_7 = arith.constant 2 : index
    %c0_8 = arith.constant 0 : index
    %11 = vector.load %arg5[%c2_7, %c0_8] : memref<8x32xf32, #tpu.memory_space<vmem>>, vector<1x32xf32>
    tpu.vector_store %arg5[%c2_7, %c0_8], %10 {strides = array<i32>} : memref<8x32xf32, #tpu.memory_space<vmem>>, vector<1x32xf32>,
    %c3 = arith.constant 3 : index
    %12 = memref.load %arg1[%c3] : memref<8xi32, #tpu.memory_space<smem>>
    %13 = arith.index_cast %12 : i32 to index
    %c0_9 = arith.constant 0 : index
    %14 = vector.load %arg3[%13, %c0_9] : memref<16x32xf32, #tpu.memory_space<vmem>>, vector<1x32xf32>
    %c3_10 = arith.constant 3 : index
    %c0_11 = arith.constant 0 : index
    %15 = vector.load %arg5[%c3_10, %c0_11] : memref<8x32xf32, #tpu.memory_space<vmem>>, vector<1x32xf32>
    tpu.vector_store %arg5[%c3_10, %c0_11], %14 {strides = array<i32>} : memref<8x32xf32, #tpu.memory_space<vmem>>, vector<1x32xf32>,
    %c4 = arith.constant 4 : index
    %16 = memref.load %arg1[%c4] : memref<8xi32, #tpu.memory_space<smem>>
    %17 = arith.index_cast %16 : i32 to index
    %c0_12 = arith.constant 0 : index
    %18 = vector.load %arg3[%17, %c0_12] : memref<16x32xf32, #tpu.memory_space<vmem>>, vector<1x32xf32>
    %c4_13 = arith.constant 4 : index
    %c0_14 = arith.constant 0 : index
    %19 = vector.load %arg5[%c4_13, %c0_14] : memref<8x32xf32, #tpu.memory_space<vmem>>, vector<1x32xf32>
    tpu.vector_store %arg5[%c4_13, %c0_14], %18 {strides = array<i32>} : memref<8x32xf32, #tpu.memory_space<vmem>>, vector<1x32xf32>,
    %c5 = arith.constant 5 : index
    %20 = memref.load %arg1[%c5] : memref<8xi32, #tpu.memory_space<smem>>
    %21 = arith.index_cast %20 : i32 to index
    %c0_15 = arith.constant 0 : index
    %22 = vector.load %arg3[%21, %c0_15] : memref<16x32xf32, #tpu.memory_space<vmem>>, vector<1x32xf32>
    %c5_16 = arith.constant 5 : index
    %c0_17 = arith.constant 0 : index
    %23 = vector.load %arg5[%c5_16, %c0_17] : memref<8x32xf32, #tpu.memory_space<vmem>>, vector<1x32xf32>
    tpu.vector_store %arg5[%c5_16, %c0_17], %22 {strides = array<i32>} : memref<8x32xf32, #tpu.memory_space<vmem>>, vector<1x32xf32>,
    %c6 = arith.constant 6 : index
    %24 = memref.load %arg1[%c6] : memref<8xi32, #tpu.memory_space<smem>>
    %25 = arith.index_cast %24 : i32 to index
    %c0_18 = arith.constant 0 : index
    %26 = vector.load %arg3[%25, %c0_18] : memref<16x32xf32, #tpu.memory_space<vmem>>, vector<1x32xf32>
    %c6_19 = arith.constant 6 : index
    %c0_20 = arith.constant 0 : index
    %27 = vector.load %arg5[%c6_19, %c0_20] : memref<8x32xf32, #tpu.memory_space<vmem>>, vector<1x32xf32>
    tpu.vector_store %arg5[%c6_19, %c0_20], %26 {strides = array<i32>} : memref<8x32xf32, #tpu.memory_space<vmem>>, vector<1x32xf32>,
    %c7 = arith.constant 7 : index
    %28 = memref.load %arg1[%c7] : memref<8xi32, #tpu.memory_space<smem>>
    %29 = arith.index_cast %28 : i32 to index
    %c0_21 = arith.constant 0 : index
    %30 = vector.load %arg3[%29, %c0_21] : memref<16x32xf32, #tpu.memory_space<vmem>>, vector<1x32xf32>
    %c7_22 = arith.constant 7 : index
    %c0_23 = arith.constant 0 : index
    %31 = vector.load %arg5[%c7_22, %c0_23] : memref<8x32xf32, #tpu.memory_space<vmem>>, vector<1x32xf32>
    tpu.vector_store %arg5[%c7_22, %c0_23], %30 {strides = array<i32>} : memref<8x32xf32, #tpu.memory_space<vmem>>, vector<1x32xf32>,
    %c0_24 = arith.constant 0 : index
    %c0_25 = arith.constant 0 : index
    %c0_26 = arith.constant 0 : index
    %32 = vector.load %arg2[%c0_24, %c0_25, %c0_26] : memref<2x8x32xf32, #tpu.memory_space<vmem>>, vector<2x8x32xf32>
    %c0_27 = arith.constant 0 : index
    %c0_28 = arith.constant 0 : index
    %33 = vector.load %arg5[%c0_27, %c0_28] : memref<8x32xf32, #tpu.memory_space<vmem>>, vector<8x32xf32>
    %34 = vector.shape_cast %33 : vector<8x32xf32> to vector<1x8x32xf32>
    %35 = vector.broadcast %34 : vector<1x8x32xf32> to vector<2x8x32xf32>
    %36 = arith.mulf %32, %35 : vector<2x8x32xf32>
    %cst = arith.constant dense<0.000000e+00> : vector<2x8xf32>
    %37 = vector.multi_reduction <add>, %36, %cst [2] : vector<2x8x32xf32> to vector<2x8xf32>
    %c0_29 = arith.constant 0 : index
    %c0_30 = arith.constant 0 : index
    %38 = vector.load %arg4[%c0_29, %c0_30] : memref<2x8xf32, #tpu.memory_space<vmem>>, vector<2x8xf32>
    tpu.vector_store %arg4[%c0_29, %c0_30], %37 {strides = array<i32>} : memref<2x8xf32, #tpu.memory_space<vmem>>, vector<2x8xf32>,
    return
  }
  func.func @transform_0(%arg0: i32, %arg1: memref<8xi32, #tpu.memory_space<smem>>) -> (i32, i32, i32) {
    %c0_i32 = arith.constant 0 : i32
    %c0_i32_0 = arith.constant 0 : i32
    %c0_i32_1 = arith.constant 0 : i32
    return %arg0, %c0_i32, %c0_i32_0 : i32, i32, i32
  }
  func.func @transform_1(%arg0: i32, %arg1: memref<8xi32, #tpu.memory_space<smem>>) -> (i32, i32) {
    %c0_i32 = arith.constant 0 : i32
    %c0_i32_0 = arith.constant 0 : i32
    %c0_i32_1 = arith.constant 0 : i32
    return %c0_i32, %c0_i32_0 : i32, i32
  }
  func.func @transform_2(%arg0: i32, %arg1: memref<8xi32, #tpu.memory_space<smem>>) -> (i32, i32) {
    %c0_i32 = arith.constant 0 : i32
    %c0_i32_0 = arith.constant 0 : i32
    return %arg0, %c0_i32 : i32, i32
  }
}

</mosaic_0001>

<llo_original>
// kernel: tpu_custom_call.1
$region0: #{tpu_custom_call.1}
  #allocation0 [shape = 'u32[]', space=smem, size = 0x4, offset = 0x4, fixed_abs, tag = 'smem constant byte address 0x4 - core index']
  #allocation1 [shape = 'u32[144,128]{1,0:T(1,128)}', space=vmem, size = 0x12000, scoped, tag = 'internal scratch']
  #allocation2 [shape = 'f32[8,32]{1,0:T(8,128)}', space=vmem, size = 0x1000, scoped, tag = 'scratch operand']
  #allocation3 [shape = 's32[1]{0}', space=sflag, size = 0x4, scoped, tag = 'scoped memory for tpu_custom_call.1']
  #allocation4 [shape = 'u8[512]{0}', space=smem, size = 0x200, scoped, tag = 'prefetched SMEM operand 0']
  %s0 = inlined_call_operand.hbm [shape: s32[8], index: 0, kind: input, shape index: {}]
  %s1 = inlined_call_operand.hbm [shape: f32[2,8,32], index: 1, kind: input, shape index: {}]
  %s2 = inlined_call_operand.hbm [shape: f32[16,32], index: 2, kind: input, shape index: {}]
  %s3 = inlined_call_operand.hbm [shape: f32[2,8], index: 3, kind: output, shape index: {}]
  %s4 = sld [smem:[#allocation0]]
  $region26: #{tpu_custom_call.1} parent=0
    _
  %s6 = ssub.s32 1, %s4
  %s7 = scalar_select 0, %s6, %s4
  %9 = dma.hbm_to_smem %s0, 16, [#allocation4], [#allocation3]
  %10 = dma.done [#allocation3], 16
  %11 = sfence
  $region1: #{tpu_custom_call.1} parent=0
    #allocation5 [shape = 'u8[8192]{0}', space=vmem, size = 0x2000, scoped, tag = 'input window, operand 1, single buffered']
    #allocation6 [shape = 's32[1]{0}', space=sflag, size = 0x4, scoped, tag = 'scoped memory for tpu_custom_call.1']
    #allocation7 [shape = 's32[1]{0}', space=sflag, size = 0x4, scoped, tag = 'scoped memory for tpu_custom_call.1']
    #allocation8 [shape = 'u8[8192]{0}', space=vmem, size = 0x2000, scoped, tag = 'input window, operand 2, single buffered']
    #allocation9 [shape = 's32[1]{0}', space=sflag, size = 0x4, scoped, tag = 'scoped memory for tpu_custom_call.1']
    #allocation10 [shape = 'u8[1024]{0}', space=vmem, size = 0x400, scoped, tag = 'output window, operand 0, single buffered']
    %12 = vsyncpa [#allocation6], 0
    %13 = vsyncpa [#allocation9], 0
    %14 = vsyncpa [#allocation7], 0
    // Predicated region
    $region2: #{tpu_custom_call.1} parent=1 // pred_check
      _
    $region3: #{tpu_custom_call.1} parent=1 // pred_check_branch
      %16 = sbr.rel (0) target = $region5
    $region4: #{tpu_custom_call.1} parent=1 // pred_region
      %s18 = ssub.s32 256, 256
      %19 = vsyncadd [#allocation6], %s18
      %s20 = sshll.u32 [#allocation5], 4
      %s21 = int_to_ptr.vmem [resolvable:$true] %s20
      %26 = dma.hbm_to_vmem [thread:$0]  %s1, 256, %s21, [#allocation6], 128, 128, 8
    $region5: #{tpu_custom_call.1} parent=1 // pred_fallthru
      _
    // Predicated region
    $region6: #{tpu_custom_call.1} parent=1 // pred_check
      _
    $region7: #{tpu_custom_call.1} parent=1 // pred_check_branch
      %28 = sbr.rel (0) target = $region9
    $region8: #{tpu_custom_call.1} parent=1 // pred_region
      %s30 = ssub.s32 256, 256
      %31 = vsyncadd [#allocation9], %s30
      %s32 = sshll.u32 [#allocation8], 4
      %s33 = int_to_ptr.vmem [resolvable:$true] %s32
      %38 = dma.hbm_to_vmem [thread:$0]  %s2, 256, %s33, [#allocation9], 128, 128, 8
    $region9: #{tpu_custom_call.1} parent=1 // pred_fallthru
      _
    // Predicated region
    $region10: #{tpu_custom_call.1} parent=1 // pred_check
      _
    $region11: #{tpu_custom_call.1} parent=1 // pred_check_branch
      %40 = sbr.rel (0) target = $region13
    $region12: #{tpu_custom_call.1} parent=1 // pred_region
      %41 = dma.done [#allocation6], 256
    $region13: #{tpu_custom_call.1} parent=1 // pred_fallthru
      _
    // Predicated region
    $region14: #{tpu_custom_call.1} parent=1 // pred_check
      _
    $region15: #{tpu_custom_call.1} parent=1 // pred_check_branch
      %43 = sbr.rel (0) target = $region17
    $region16: #{tpu_custom_call.1} parent=1 // pred_region
      %44 = dma.done [#allocation9], 256
    $region17: #{tpu_custom_call.1} parent=1 // pred_fallthru
      _
    %s45 = sld [smem:[#allocation4]]
    %s46 = scalar_lea.vmem [#allocation8], %s45
    %v47 = vld [vmem:[%s46] sm:$0x1]
    %vm48 = vcmask 253952
    %49 = vst.msk [vmem:[#allocation2] sm:$0x1] %vm48, %v47
    %s50 = sld [smem:[#allocation4 + $0x1]]
    %s51 = scalar_lea.vmem [#allocation8], %s50
    %v52 = vld [vmem:[%s51] sm:$0x1]
    %53 = vst.msk [vmem:[#allocation2 + $0x1] sm:$0x1] %vm48, %v52
    %s54 = sld [smem:[#allocation4 + $0x2]]
    %s55 = scalar_lea.vmem [#allocation8], %s54
    %v56 = vld [vmem:[%s55] sm:$0x1]
    %57 = vst.msk [vmem:[#allocation2 + $0x2] sm:$0x1] %vm48, %v56
    %s58 = sld [smem:[#allocation4 + $0x3]]
    %s59 = scalar_lea.vmem [#allocation8], %s58
    %v60 = vld [vmem:[%s59] sm:$0x1]
    %61 = vst.msk [vmem:[#allocation2 + $0x3] sm:$0x1] %vm48, %v60
    %s62 = sld [smem:[#allocation4 + $0x4]]
    %s63 = scalar_lea.vmem [#allocation8], %s62
    %v64 = vld [vmem:[%s63] sm:$0x1]
    %65 = vst.msk [vmem:[#allocation2 + $0x4] sm:$0x1] %vm48, %v64
    %s66 = sld [smem:[#allocation4 + $0x5]]
    %s67 = scalar_lea.vmem [#allocation8], %s66
    %v68 = vld [vmem:[%s67] sm:$0x1]
    %69 = vst.msk [vmem:[#allocation2 + $0x5] sm:$0x1] %vm48, %v68
    %s70 = sld [smem:[#allocation4 + $0x6]]
    %s71 = scalar_lea.vmem [#allocation8], %s70
    %v72 = vld [vmem:[%s71] sm:$0x1]
    %73 = vst.msk [vmem:[#allocation2 + $0x6] sm:$0x1] %vm48, %v72
    %s74 = sld [smem:[#allocation4 + $0x7]]
    %s75 = scalar_lea.vmem [#allocation8], %s74
    %v76 = vld [vmem:[%s75] sm:$0x1]
    %77 = vst.msk [vmem:[#allocation2 + $0x7] sm:$0x1] %vm48, %v76
    %v78 = vld [vmem:[#allocation5] sm:$0xff]
    %v79 = vld [vmem:[#allocation5 + $0x8] sm:$0xff]
    %v80 = vld [vmem:[#allocation2] sm:$0xff]
    %v81 = vmul.f32 %v78, %v80
    %v82 = vmul.f32 %v79, %v80
    %vm83 = vcmask 261120
    %v84 = vsel %vm83, %v81, 0.0
    %85 = vadd.xlane.f32.xlu0 %v84
    %v86 = vpop.xlane.xlu0 %85
    %v87 = vsel %vm83, %v82, 0.0
    %88 = vadd.xlane.f32.xlu0 %v87
    %v89 = vpop.xlane.xlu0 %88
    %v92 = vlaneseq
    %v93 = vand.u32 %v92, 127
    %v94 = vlaneseq
    %v95 = vshrl.u32 %v94, 7
    %v96 = vsub.s32 %v93, %v95
    %v97 = vrot.slane %v86, %v96
    %v98 = vlaneseq
    %v99 = vshrl.u32 %v98, 7
    %v100 = vsub.s32 %v93, %v99
    %v101 = vrot.slane %v89, %v100
    %vm102 = vcmask 1041409
    %v103 = vsel %vm102, %v101, %v97
    %vm105 = vcmask 58368
    %106 = vst.msk [vmem:[#allocation10] sm:$0x3] %vm105, %v103
    // Predicated region
    $region18: #{tpu_custom_call.1} parent=1 // pred_check
      _
    $region19: #{tpu_custom_call.1} parent=1 // pred_check_branch
      %108 = sbr.rel (0) target = $region21
    $region20: #{tpu_custom_call.1} parent=1 // pred_region
      %s110 = ssub.s32 32, 32
      %111 = vsyncadd [#allocation7], %s110
      %s113 = sshll.u32 [#allocation10], 4
      %s114 = int_to_ptr.vmem [resolvable:$true] %s113
      %116 = dma.vmem_to_hbm [thread:$0]  %s114, 32, %s3, [#allocation7]
    $region21: #{tpu_custom_call.1} parent=1 // pred_fallthru
      _
    // Predicated region
    $region22: #{tpu_custom_call.1} parent=1 // pred_check
      _
    $region23: #{tpu_custom_call.1} parent=1 // pred_check_branch
      %118 = sbr.rel (0) target = $region25
    $region24: #{tpu_custom_call.1} parent=1 // pred_region
      %119 = dma.done [#allocation7], 32
    $region25: #{tpu_custom_call.1} parent=1 // pred_fallthru
      _
    %120 = vsyncpa [#allocation6], 1
    %121 = vsyncpa [#allocation9], 1
    %122 = vsyncpa [#allocation7], 1

</llo_original>
